<compile_context>
chip_gen: v7x
topology: tpu7x:2x2x1
jax: 0.10.0
libtpu: 0.0.40
codegen_flags: <defaults>
</compile_context>

<pallas_src>
import functools

import jax
import jax.numpy as jnp
from jax.experimental import pallas as pl
from jax.experimental.pallas import tpu as pltpu

LANE = 128      # hidden-dim padding target (keeps matmul lane dims aligned)
SUBLANE = 8     # f32 sublane packing -> batch-tile multiple


def _round_up(n, m):
    return (n + m - 1) // m * m


# ---------------------------------------------------------------------------
# Pallas kernel: pure fused Linear -> ReLU -> Linear on one batch tile
# ---------------------------------------------------------------------------
def wcmi_mlp_kernel(x_ref, w1_ref, b1_ref, w2_ref, b2_ref, o_ref):
    # x_ref: (TB, F_in), w1: (F_in, H_p), b1: (1, H_p),
    # w2: (H_p, F_out),  b2: (1, F_out),  o: (TB, F_out)
    h = jnp.dot(x_ref[...], w1_ref[...], preferred_element_type=jnp.float32)
    h = jnp.maximum(h + b1_ref[...], 0.0)
    y = jnp.dot(h, w2_ref[...], preferred_element_type=jnp.float32) + b2_ref[...]
    o_ref[...] = y.astype(o_ref.dtype)


# ---------------------------------------------------------------------------
# One-time parameter prep: fold bounds into weights, pad ONLY the hidden dim
# ---------------------------------------------------------------------------
def prepare_params(bounds_min_in, bounds_max_in, w1, b1, w2, b2,
                   bounds_min_out, bounds_max_out, hidden_pad=LANE):
    """Fold the affine (de)standardization into the MLP parameters.

      x_std = x * s_in + t_in,   s_in = 2/(bmax_in-bmin_in),
                                 t_in = -2*bmin_in/(bmax_in-bmin_in) - 1
      out   = y * s_out + t_out, s_out = (bmax_out-bmin_out)/2,
                                 t_out = s_out + bmin_out   (from (y+1)/2 form)

      w1' = s_in[:,None]*w1            b1' = b1 + t_in @ w1
      w2' = w2 * s_out[None,:]         b2' = s_out*(b2 + 1) + bmin_out

    Only the hidden dim is zero-padded (to `hidden_pad`); the true feature
    widths f_in / f_out are kept so the kernel moves no padded HBM bytes.
    """
    f_in, hidden = w1.shape
    _, f_out = w2.shape

    bmin_in = bounds_min_in.reshape(1, f_in).astype(jnp.float32)
    bmax_in = bounds_max_in.reshape(1, f_in).astype(jnp.float32)
    bmin_out = bounds_min_out.reshape(1, f_out).astype(jnp.float32)
    bmax_out = bounds_max_out.reshape(1, f_out).astype(jnp.float32)

    s_in = 2.0 / (bmax_in - bmin_in)                        # (1, f_in)
    t_in = -2.0 * bmin_in / (bmax_in - bmin_in) - 1.0       # (1, f_in)
    s_out = 0.5 * (bmax_out - bmin_out)                     # (1, f_out)

    w1f = s_in.reshape(f_in, 1) * w1.astype(jnp.float32)
    b1f = b1.reshape(1, hidden).astype(jnp.float32) + t_in @ w1.astype(jnp.float32)
    w2f = w2.astype(jnp.float32) * s_out
    b2f = s_out * (b2.reshape(1, f_out).astype(jnp.float32) + 1.0) + bmin_out

    hid_p = _round_up(hidden, hidden_pad)

    # Padded hidden units: zero bias -> ReLU(0)=0, zero w2 rows -> no leakage.
    w1p = jnp.zeros((f_in, hid_p), jnp.float32).at[:, :hidden].set(w1f)
    b1p = jnp.zeros((1, hid_p), jnp.float32).at[:, :hidden].set(b1f)
    w2p = jnp.zeros((hid_p, f_out), jnp.float32).at[:hidden, :].set(w2f)
    b2p = b2f                                               # (1, f_out)

    return w1p, b1p, w2p, b2p


# ---------------------------------------------------------------------------
# Forward wrapper: batch grid, narrow feature dims, double-buffered x/out tiles
# ---------------------------------------------------------------------------
@functools.partial(jax.jit, static_argnames=("block_b",))
def wcmi_forward(x, w1p, b1p, w2p, b2p, *, block_b=1024):
    B, f_in = x.shape
    hid_p = w1p.shape[1]
    f_out = w2p.shape[1]

    # Batch tile: multiple of the f32 sublane width, capped at block_b.
    tb = min(block_b, _round_up(B, SUBLANE))
    # Ensure >= 2 grid steps whenever the batch allows it, so the "parallel"
    # batch axis keeps both v7x TensorCores busy and the pipeline overlaps.
    if tb >= 2 * SUBLANE and _round_up(B, tb) // tb < 2:
        tb = _round_up((B + 1) // 2, SUBLANE)
    bp = _round_up(B, tb)

    xf = x.astype(jnp.float32)
    # Only the batch dim is padded (to a tile multiple); features stay narrow.
    xp = xf if bp == B else jnp.zeros((bp, f_in), jnp.float32).at[:B].set(xf)

    out_p = pl.pallas_call(
        wcmi_mlp_kernel,
        out_shape=jax.ShapeDtypeStruct((bp, f_out), jnp.float32),
        grid_spec=pltpu.PrefetchScalarGridSpec(
            num_scalar_prefetch=0,
            grid=(bp // tb,),
            in_specs=[
                # Full-last-dim blocks: contiguous HBM DMA, no padded bytes.
                pl.BlockSpec((tb, f_in), lambda i: (i, 0)),      # x tile
                pl.BlockSpec((f_in, hid_p), lambda i: (0, 0)),   # w1 resident
                pl.BlockSpec((1, hid_p), lambda i: (0, 0)),      # b1 resident
                pl.BlockSpec((hid_p, f_out), lambda i: (0, 0)),  # w2 resident
                pl.BlockSpec((1, f_out), lambda i: (0, 0)),      # b2 resident
            ],
            out_specs=pl.BlockSpec((tb, f_out), lambda i: (i, 0)),
        ),
        compiler_params=pltpu.CompilerParams(
            dimension_semantics=("parallel",)),   # shard batch across TCs on v7x
    )(xp, w1p, b1p, w2p, b2p)

    return out_p if bp == B else out_p[:B]


# ---------------------------------------------------------------------------
# Plain-JAX reference (mirrors WCMIModule.forward semantics exactly)
# ---------------------------------------------------------------------------
def wcmi_forward_ref(x, bmin_in, bmax_in, w1, b1, w2, b2, bmin_out, bmax_out):
    x_std = 2.0 * (x - bmin_in) / (bmax_in - bmin_in) - 1.0
    h = jnp.maximum(x_std @ w1 + b1, 0.0)
    y = h @ w2 + b2
    return (bmax_out - bmin_out) * ((y + 1.0) * 0.5) + bmin_out


if __name__ == "__main__":
    # Synthetic simulation_info: 6 simulation outputs (model inputs),
    # 7 simulation inputs (model outputs), reverse=False.
    NUM_SIM_OUTPUTS = 6   # model input size
    NUM_SIM_INPUTS = 7    # model output size
    HIDDEN = 32
    BATCH = 64            # small, but enough for a 2-step grid

    key = jax.random.PRNGKey(0)
    k_x, k_w1, k_b1, k_w2, k_b2 = jax.random.split(key, 5)

    # Deterministic synthetic simulation bounds (strictly max > min).
    bounds_min_in = jnp.linspace(-2.0, -0.5, NUM_SIM_OUTPUTS,
                                 dtype=jnp.float32).reshape(1, NUM_SIM_OUTPUTS)
    bounds_max_in = jnp.linspace(1.0, 3.0, NUM_SIM_OUTPUTS,
                                 dtype=jnp.float32).reshape(1, NUM_SIM_OUTPUTS)
    bounds_min_out = jnp.linspace(0.0, 1.0, NUM_SIM_INPUTS,
                                  dtype=jnp.float32).reshape(1, NUM_SIM_INPUTS)
    bounds_max_out = jnp.linspace(5.0, 10.0, NUM_SIM_INPUTS,
                                  dtype=jnp.float32).reshape(1, NUM_SIM_INPUTS)

    # Deterministic parameter init for self.net (Linear -> ReLU -> Linear).
    w1 = (jax.random.normal(k_w1, (NUM_SIM_OUTPUTS, HIDDEN), jnp.float32)
          * (1.0 / jnp.sqrt(NUM_SIM_OUTPUTS)))
    b1 = jax.random.normal(k_b1, (1, HIDDEN), jnp.float32) * 0.01
    w2 = (jax.random.normal(k_w2, (HIDDEN, NUM_SIM_INPUTS), jnp.float32)
          * (1.0 / jnp.sqrt(HIDDEN)))
    b2 = jax.random.normal(k_b2, (1, NUM_SIM_INPUTS), jnp.float32) * 0.01

    # Input: raw (un-normalized) simulation outputs within the bounds.
    u = jax.random.uniform(k_x, (BATCH, NUM_SIM_OUTPUTS), jnp.float32)
    x = bounds_min_in + u * (bounds_max_in - bounds_min_in)

    # One-time prep: fold bounds into the weights, pad only the hidden dim.
    w1p, b1p, w2p, b2p = prepare_params(
        bounds_min_in, bounds_max_in, w1, b1, w2, b2,
        bounds_min_out, bounds_max_out)

    out = wcmi_forward(x, w1p, b1p, w2p, b2p)
    out = jax.block_until_ready(out)

    ref = wcmi_forward_ref(x, bounds_min_in, bounds_max_in, w1, b1, w2, b2,
                           bounds_min_out, bounds_max_out)
    assert out.shape == (BATCH, NUM_SIM_INPUTS)
    assert jnp.allclose(out, ref, atol=1e-4, rtol=1e-4), (
        float(jnp.max(jnp.abs(out - ref))))

    # TODO(synk): save()/load() checkpoint I/O and version checks have no
    # kernel equivalent and are intentionally omitted.
    # TODO(synk): bf16 x/weight streaming (f32 accumulation) would halve HBM
    # bytes on v6e/v7x but would not hold the 1e-4 tolerance; kept f32.
    print("KERNEL_OK")
</pallas_src>

<mosaic_0001>
module attributes {stable_mosaic.version = 11 : i64} {
  func.func @wcmi_mlp_kernel(%arg0: i32, %arg1: memref<32x6xf32, #tpu.memory_space<vmem>>, %arg2: memref<6x128xf32, #tpu.memory_space<vmem>>, %arg3: memref<1x128xf32, #tpu.memory_space<vmem>>, %arg4: memref<128x7xf32, #tpu.memory_space<vmem>>, %arg5: memref<1x7xf32, #tpu.memory_space<vmem>>, %arg6: memref<32x7xf32, #tpu.memory_space<vmem>>) attributes {dimension_semantics = [#tpu.dimension_semantics<parallel>], iteration_bounds = array<i64: 2>, scalar_prefetch = 0 : i64, scratch_operands = 0 : i64, tpu.core_type = #tpu.core_type<tc>, window_params = [{transform_indices = @transform_0, window_bounds = array<i64: 32, 6>}, {pipeline_mode = #tpu.pipeline_mode<synchronous>, transform_indices = @transform_1, window_bounds = array<i64: 6, 128>}, {pipeline_mode = #tpu.pipeline_mode<synchronous>, transform_indices = @transform_2, window_bounds = array<i64: 1, 128>}, {pipeline_mode = #tpu.pipeline_mode<synchronous>, transform_indices = @transform_3, window_bounds = array<i64: 128, 7>}, {pipeline_mode = #tpu.pipeline_mode<synchronous>, transform_indices = @transform_4, window_bounds = array<i64: 1, 7>}, {transform_indices = @transform_5, window_bounds = array<i64: 32, 7>}]} {
    %c0 = arith.constant 0 : index
    %c0_0 = arith.constant 0 : index
    %0 = vector.load %arg1[%c0, %c0_0] : memref<32x6xf32, #tpu.memory_space<vmem>>, vector<32x6xf32>
    %c0_1 = arith.constant 0 : index
    %c0_2 = arith.constant 0 : index
    %1 = vector.load %arg2[%c0_1, %c0_2] : memref<6x128xf32, #tpu.memory_space<vmem>>, vector<6x128xf32>
    %cst = arith.constant dense<0.000000e+00> : vector<32x128xf32>
    %2 = tpu.matmul %0, %1, %cst {dimension_numbers = #tpu.dot_dimension_numbers<[1], [0], [0], [1], [0, 0, 1, 1], [], []>} : vector<32x6xf32>, vector<6x128xf32>, vector<32x128xf32> -> vector<32x128xf32>
    %c0_3 = arith.constant 0 : index
    %c0_4 = arith.constant 0 : index
    %3 = vector.load %arg3[%c0_3, %c0_4] : memref<1x128xf32, #tpu.memory_space<vmem>>, vector<1x128xf32>
    %4 = vector.broadcast %3 : vector<1x128xf32> to vector<32x128xf32>
    %5 = arith.addf %2, %4 : vector<32x128xf32>
    %cst_5 = arith.constant 0.000000e+00 : f32
    %6 = vector.broadcast %cst_5 : f32 to vector<32x128xf32>
    %7 = arith.maximumf %5, %6 : vector<32x128xf32>
    %c0_6 = arith.constant 0 : index
    %c0_7 = arith.constant 0 : index
    %8 = vector.load %arg4[%c0_6, %c0_7] : memref<128x7xf32, #tpu.memory_space<vmem>>, vector<128x7xf32>
    %cst_8 = arith.constant dense<0.000000e+00> : vector<32x7xf32>
    %9 = tpu.matmul %7, %8, %cst_8 {dimension_numbers = #tpu.dot_dimension_numbers<[1], [0], [0], [1], [0, 0, 1, 1], [], []>} : vector<32x128xf32>, vector<128x7xf32>, vector<32x7xf32> -> vector<32x7xf32>
    %c0_9 = arith.constant 0 : index
    %c0_10 = arith.constant 0 : index
    %10 = vector.load %arg5[%c0_9, %c0_10] : memref<1x7xf32, #tpu.memory_space<vmem>>, vector<1x7xf32>
    %11 = vector.broadcast %10 : vector<1x7xf32> to vector<32x7xf32>
    %12 = arith.addf %9, %11 : vector<32x7xf32>
    %c0_11 = arith.constant 0 : index
    %c0_12 = arith.constant 0 : index
    %13 = vector.load %arg6[%c0_11, %c0_12] : memref<32x7xf32, #tpu.memory_space<vmem>>, vector<32x7xf32>
    tpu.vector_store %arg6[%c0_11, %c0_12], %12 {strides = array<i32>} : memref<32x7xf32, #tpu.memory_space<vmem>>, vector<32x7xf32>,
    return
  }
  func.func @transform_0(%arg0: i32) -> (i32, i32) {
    %c0_i32 = arith.constant 0 : i32
    %c0_i32_0 = arith.constant 0 : i32
    return %arg0, %c0_i32 : i32, i32
  }
  func.func @transform_1(%arg0: i32) -> (i32, i32) {
    %c0_i32 = arith.constant 0 : i32
    %c0_i32_0 = arith.constant 0 : i32
    %c0_i32_1 = arith.constant 0 : i32
    return %c0_i32, %c0_i32_0 : i32, i32
  }
  func.func @transform_2(%arg0: i32) -> (i32, i32) {
    %c0_i32 = arith.constant 0 : i32
    %c0_i32_0 = arith.constant 0 : i32
    %c0_i32_1 = arith.constant 0 : i32
    return %c0_i32, %c0_i32_0 : i32, i32
  }
  func.func @transform_3(%arg0: i32) -> (i32, i32) {
    %c0_i32 = arith.constant 0 : i32
    %c0_i32_0 = arith.constant 0 : i32
    %c0_i32_1 = arith.constant 0 : i32
    return %c0_i32, %c0_i32_0 : i32, i32
  }
  func.func @transform_4(%arg0: i32) -> (i32, i32) {
    %c0_i32 = arith.constant 0 : i32
    %c0_i32_0 = arith.constant 0 : i32
    %c0_i32_1 = arith.constant 0 : i32
    return %c0_i32, %c0_i32_0 : i32, i32
  }
  func.func @transform_5(%arg0: i32) -> (i32, i32) {
    %c0_i32 = arith.constant 0 : i32
    %c0_i32_0 = arith.constant 0 : i32
    return %arg0, %c0_i32 : i32, i32
  }
}

</mosaic_0001>

<llo_original>
// kernel: wcmi_forward.1
$region0: #{wcmi_forward.1}
  #allocation0 [shape = 'u32[]', space=smem, size = 0x4, offset = 0x4, fixed_abs, tag = 'smem constant byte address 0x4 - core index']
  #allocation1 [shape = 'u32[144,128]{1,0:T(1,128)}', space=vmem, size = 0x12000, scoped, tag = 'internal scratch']
  %s0 = inlined_call_operand.vmem [shape: f32[64,6], index: 0, kind: input, shape index: {}]
  %s1 = inlined_call_operand.vmem [shape: f32[6,128], index: 1, kind: input, shape index: {}]
  %s2 = inlined_call_operand.vmem [shape: f32[1,128], index: 2, kind: input, shape index: {}]
  %s3 = inlined_call_operand.vmem [shape: f32[128,7], index: 3, kind: input, shape index: {}]
  %s4 = inlined_call_operand.vmem [shape: f32[1,7], index: 4, kind: input, shape index: {}]
  %s5 = inlined_call_operand.vmem [shape: f32[64,7], index: 5, kind: output, shape index: {}]
  %s6 = sld [smem:[#allocation0]]
  $region53: #{wcmi_forward.1} parent=0
    _
  %s8 = ssub.s32 1, %s6
  %s9 = scalar_select 0, %s8, %s6
  loop: start=0, step=1, limit=4
  $region2: #{wcmi_forward.1} parent=0 // loop_pre_header
    _
  $region3: #{wcmi_forward.1} parent=0 // loop_header
    %s11 = sphi 0, %s15
    %p12 = scmp.ge.s32.totalorder %s11, 4
    %s21 = sphi 0, %s23
    %s24 = sphi 0, %s21
    %s25 = sphi 0, %s24
    %s41 = sphi 0, %s25
    %s45 = sphi 0, %s45
    %s47 = sphi 0, %s45
    %s48 = sphi 0, %s47
    %s62 = sphi 0, %s48
    %s66 = sphi 0, %s66
    %s68 = sphi 0, %s66
    %s69 = sphi 0, %s68
    %s83 = sphi 0, %s69
    %s87 = sphi 0, %s87
    %s89 = sphi 0, %s87
    %s90 = sphi 0, %s89
    %s104 = sphi 0, %s90
    %s108 = sphi 0, %s108
    %s110 = sphi 0, %s108
    %s111 = sphi 0, %s110
    %s125 = sphi 0, %s111
    %s131 = sphi 0, %s133
    %s134 = sphi 0, %s131
    %s135 = sphi 0, %s134
    %s151 = sphi 0, %s135
  $region4: #{wcmi_forward.1} parent=0 // loop_header_branch
    %14 = sbr.rel (%p12) target = $region8
  $region5: #{wcmi_forward.1} parent=0 // loop_body
    %s16 = ssub.s32 %s11, 1
    %s17 = ssub.s32 %s11, 2
    %s18 = sadd.s32 %s11, 1
    %s19 = ssub.s32 %s11, %s18
    %p20 = scmp.eq.s32.totalorder %s19, 0
    %s22 = sadd.s32 %s21, 1
    %s23 = scalar_select %p20, %s21, %s22
    %p26 = pneg %p20
    %p27 = scmp.eq.s32.totalorder %s11, 1
    %p28 = por %p26, %p27
    %p29 = scmp.ne.s32.totalorder %s21, %s24
    %p30 = scmp.eq.s32.totalorder %s11, 0
    %p31 = por %p29, %p30
    %p32 = scmp.ne.s32.totalorder %s21, %s24
    %p33 = scmp.eq.s32.totalorder %s16, 1
    %p34 = por %p32, %p33
    %p35 = scmp.ne.s32.totalorder %s24, %s25
    %p36 = scmp.eq.s32.totalorder %s16, 0
    %p37 = por %p35, %p36
    %p38 = scmp.ne.s32.totalorder %s24, %s25
    %p39 = scmp.eq.s32.totalorder %s17, 1
    %p40 = por %p38, %p39
    %p42 = scmp.ne.s32.totalorder %s25, %s41
    %p43 = scmp.eq.s32.totalorder %s17, 0
    %p44 = por %p42, %p43
    %s46 = sadd.s32 %s45, 1
    %p49 = scmp.eq.s32.totalorder %s11, 1
    %p50 = scmp.ne.s32.totalorder %s45, %s47
    %p51 = scmp.eq.s32.totalorder %s11, 0
    %p52 = por %p50, %p51
    %p53 = scmp.ne.s32.totalorder %s45, %s47
    %p54 = scmp.eq.s32.totalorder %s16, 1
    %p55 = por %p53, %p54
    %p56 = scmp.ne.s32.totalorder %s47, %s48
    %p57 = scmp.eq.s32.totalorder %s16, 0
    %p58 = por %p56, %p57
    %p59 = scmp.ne.s32.totalorder %s47, %s48
    %p60 = scmp.eq.s32.totalorder %s17, 1
    %p61 = por %p59, %p60
    %p63 = scmp.ne.s32.totalorder %s48, %s62
    %p64 = scmp.eq.s32.totalorder %s17, 0
    %p65 = por %p63, %p64
    %s67 = sadd.s32 %s66, 1
    %p70 = scmp.eq.s32.totalorder %s11, 1
    %p71 = scmp.ne.s32.totalorder %s66, %s68
    %p72 = scmp.eq.s32.totalorder %s11, 0
    %p73 = por %p71, %p72
    %p74 = scmp.ne.s32.totalorder %s66, %s68
    %p75 = scmp.eq.s32.totalorder %s16, 1
    %p76 = por %p74, %p75
    %p77 = scmp.ne.s32.totalorder %s68, %s69
    %p78 = scmp.eq.s32.totalorder %s16, 0
    %p79 = por %p77, %p78
    %p80 = scmp.ne.s32.totalorder %s68, %s69
    %p81 = scmp.eq.s32.totalorder %s17, 1
    %p82 = por %p80, %p81
    %p84 = scmp.ne.s32.totalorder %s69, %s83
    %p85 = scmp.eq.s32.totalorder %s17, 0
    %p86 = por %p84, %p85
    %s88 = sadd.s32 %s87, 1
    %p91 = scmp.eq.s32.totalorder %s11, 1
    %p92 = scmp.ne.s32.totalorder %s87, %s89
    %p93 = scmp.eq.s32.totalorder %s11, 0
    %p94 = por %p92, %p93
    %p95 = scmp.ne.s32.totalorder %s87, %s89
    %p96 = scmp.eq.s32.totalorder %s16, 1
    %p97 = por %p95, %p96
    %p98 = scmp.ne.s32.totalorder %s89, %s90
    %p99 = scmp.eq.s32.totalorder %s16, 0
    %p100 = por %p98, %p99
    %p101 = scmp.ne.s32.totalorder %s89, %s90
    %p102 = scmp.eq.s32.totalorder %s17, 1
    %p103 = por %p101, %p102
    %p105 = scmp.ne.s32.totalorder %s90, %s104
    %p106 = scmp.eq.s32.totalorder %s17, 0
    %p107 = por %p105, %p106
    %s109 = sadd.s32 %s108, 1
    %p112 = scmp.eq.s32.totalorder %s11, 1
    %p113 = scmp.ne.s32.totalorder %s108, %s110
    %p114 = scmp.eq.s32.totalorder %s11, 0
    %p115 = por %p113, %p114
    %p116 = scmp.ne.s32.totalorder %s108, %s110
    %p117 = scmp.eq.s32.totalorder %s16, 1
    %p118 = por %p116, %p117
    %p119 = scmp.ne.s32.totalorder %s110, %s111
    %p120 = scmp.eq.s32.totalorder %s16, 0
    %p121 = por %p119, %p120
    %p122 = scmp.ne.s32.totalorder %s110, %s111
    %p123 = scmp.eq.s32.totalorder %s17, 1
    %p124 = por %p122, %p123
    %p126 = scmp.ne.s32.totalorder %s111, %s125
    %p127 = scmp.eq.s32.totalorder %s17, 0
    %p128 = por %p126, %p127
    %s129 = ssub.s32 %s11, %s18
    %p130 = scmp.eq.s32.totalorder %s129, 0
    %s132 = sadd.s32 %s131, 1
    %s133 = scalar_select %p130, %s131, %s132
    %p136 = pneg %p130
    %p137 = scmp.eq.s32.totalorder %s11, 1
    %p138 = por %p136, %p137
    %p139 = scmp.ne.s32.totalorder %s131, %s134
    %p140 = scmp.eq.s32.totalorder %s11, 0
    %p141 = por %p139, %p140
    %p142 = scmp.ne.s32.totalorder %s131, %s134
    %p143 = scmp.eq.s32.totalorder %s16, 1
    %p144 = por %p142, %p143
    %p145 = scmp.ne.s32.totalorder %s134, %s135
    %p146 = scmp.eq.s32.totalorder %s16, 0
    %p147 = por %p145, %p146
    %p148 = scmp.ne.s32.totalorder %s134, %s135
    %p149 = scmp.eq.s32.totalorder %s17, 1
    %p150 = por %p148, %p149
    %p152 = scmp.ne.s32.totalorder %s135, %s151
    %p153 = scmp.eq.s32.totalorder %s17, 0
    %p154 = por %p152, %p153
    %p155 = scmp.le.s32.totalorder 1, %s11
    %p156 = scmp.lt.s32.totalorder %s11, 3
    %p157 = pnand %p155, %p156
    %p158 = pneg %p157
    // Predicated region
    $region9: #{wcmi_forward.1} parent=5 // pred_check
      _
    $region10: #{wcmi_forward.1} parent=5 // pred_check_branch
      %160 = sbr.rel (%p157) target = $region12
    $region11: #{wcmi_forward.1} parent=5 // pred_region
      %s161 = ssub.s32 %s11, 1
      // Predicated region
      $region13: #{wcmi_forward.1} parent=11 // pred_check
        %p162 = pneg %p58
      $region14: #{wcmi_forward.1} parent=11 // pred_check_branch
        %164 = sbr.rel (%p162) target = $region16
      $region15: #{wcmi_forward.1} parent=11 // pred_region
        _
      $region16: #{wcmi_forward.1} parent=11 // pred_fallthru
        _
      // Predicated region
      $region17: #{wcmi_forward.1} parent=11 // pred_check
        %p165 = pneg %p79
      $region18: #{wcmi_forward.1} parent=11 // pred_check_branch
        %167 = sbr.rel (%p165) target = $region20
      $region19: #{wcmi_forward.1} parent=11 // pred_region
        _
      $region20: #{wcmi_forward.1} parent=11 // pred_fallthru
        _
      // Predicated region
      $region21: #{wcmi_forward.1} parent=11 // pred_check
        %p168 = pneg %p100
      $region22: #{wcmi_forward.1} parent=11 // pred_check_branch
        %170 = sbr.rel (%p168) target = $region24
      $region23: #{wcmi_forward.1} parent=11 // pred_region
        _
      $region24: #{wcmi_forward.1} parent=11 // pred_fallthru
        _
      // Predicated region
      $region25: #{wcmi_forward.1} parent=11 // pred_check
        %p171 = pneg %p121
      $region26: #{wcmi_forward.1} parent=11 // pred_check_branch
        %173 = sbr.rel (%p171) target = $region28
      $region27: #{wcmi_forward.1} parent=11 // pred_region
        _
      $region28: #{wcmi_forward.1} parent=11 // pred_fallthru
        _
    $region12: #{wcmi_forward.1} parent=5 // pred_fallthru
      _
    %p174 = scmp.lt.s32.totalorder %s11, 2
    // Predicated region
    $region29: #{wcmi_forward.1} parent=5 // pred_check
      %p175 = pneg %p174
    $region30: #{wcmi_forward.1} parent=5 // pred_check_branch
      %177 = sbr.rel (%p175) target = $region32
    $region31: #{wcmi_forward.1} parent=5 // pred_region
      // Predicated region
      $region33: #{wcmi_forward.1} parent=31 // pred_check
        %p178 = pneg %p31
      $region34: #{wcmi_forward.1} parent=31 // pred_check_branch
        %180 = sbr.rel (%p178) target = $region36
      $region35: #{wcmi_forward.1} parent=31 // pred_region
        %s181 = smul.u32 4, %s11
        %p182 = scmp.lt.s32.totalorder %s181, 7
        %s183 = scalar_select %p182, %s181, 7
        %s184 = smul.addr %s183, 8
        %s185 = scalar_lea.vmem %s0, %s184
        %s186 = smul.u32 4, %s11
      $region36: #{wcmi_forward.1} parent=31 // pred_fallthru
        _
    $region32: #{wcmi_forward.1} parent=5 // pred_fallthru
      _
    %p187 = scmp.le.s32.totalorder 1, %s11
    %p188 = scmp.lt.s32.totalorder %s11, 3
    %p189 = pnand %p187, %p188
    %p190 = pneg %p189
    // Predicated region
    $region37: #{wcmi_forward.1} parent=5 // pred_check
      _
    $region38: #{wcmi_forward.1} parent=5 // pred_check_branch
      %192 = sbr.rel (%p189) target = $region40
    $region39: #{wcmi_forward.1} parent=5 // pred_region
      %s193 = ssub.s32 %s11, 1
      %s194 = smul.u32 4, %s16
      %p195 = scmp.lt.s32.totalorder %s194, 7
      %s196 = scalar_select %p195, %s194, 7
      %s197 = smul.addr %s196, 8
      %s198 = scalar_lea.vmem %s0, %s197
      %p199 = pneg %p37
      %p200 = pneg %p34
      %p201 = pneg %p58
      %p202 = pneg %p55
      %p203 = pneg %p79
      %p204 = pneg %p76
      %p205 = pneg %p100
      %p206 = pneg %p97
      %p207 = pneg %p121
      %p208 = pneg %p118
      %p209 = pneg %p147
      %p210 = pneg %p144
      %s211 = smul.u32 4, %s16
      %p212 = scmp.lt.s32.totalorder %s211, 7
      %s213 = scalar_select %p212, %s211, 7
      %s214 = smul.addr %s213, 8
      %s215 = scalar_lea.vmem %s5, %s214
      %s216 = smul.u32 4, %s16
      %p217 = scmp.lt.s32.totalorder %s216, 7
      %s218 = scalar_select %p217, %s216, 7
      %s219 = smul.addr %s218, 8
      %s220 = scalar_lea.vmem %s0, %s219
      %s221 = smul.u32 4, %s16
      %s222 = smul.u32 4, %s16
      %p223 = scmp.lt.s32.totalorder %s222, 7
      %s224 = scalar_select %p223, %s222, 7
      %s225 = smul.addr %s224, 8
      %s226 = scalar_lea.vmem %s5, %s225
      %s227 = smul.u32 4, %s16
      %v228 = vld [vmem:[%s220] sm:$0xff]
      %v229 = vld [vmem:[%s220 + $0x8] sm:$0xff]
      %v230 = vld [vmem:[%s220 + $0x10] sm:$0xff]
      %v231 = vld [vmem:[%s220 + $0x18] sm:$0xff]
      %v232 = vld [vmem:[%s1] sm:$0x3f]
      %v233 = vld [vmem:[%s2] sm:$0x1]
      %v235 = vlaneseq
      %v236 = vshrl.u32 %v235, 7
      %v237 = vsub.s32 0, %v236
      %v238 = vrot.slane %v233, %v237
      %vm240 = vcmask 48128
      %v242 = vsel %vm240, %v228, 0
      %v245 = vsel %vm240, %v229, 0
      %v248 = vsel %vm240, %v230, 0
      %v251 = vsel %vm240, %v231, 0
      %vm253 = vcmask 1045504
      %v255 = vsel %vm253, %v232, 0
      %257 = vmatprep.subr.mxu0 0.0
      %258 = vmatpush1.msra.mxu0 %v255
      %259 = vmatprep.subr.mxu0 0.0
      %260 = vmatpush1.msra.mxu0 0.0
      %261 = vmatprep.subr.mxu0 0.0
      %262 = vmatpush1.msra.mxu0 0.0
      %263 = vmatprep.subr.mxu0 0.0
      %264 = vmatpush1.msra.mxu0 0.0
      %265 = vmatprep.subr.mxu0 0.0
      %266 = vmatpush1.msra.mxu0 0.0
      %267 = vmatprep.subr.mxu0 0.0
      %268 = vmatpush1.msra.mxu0 0.0
      %269 = vmatprep.subr.mxu0 0.0
      %270 = vmatpush1.msra.mxu0 0.0
      %271 = vmatprep.subr.mxu0 0.0
      %272 = vmatpush1.msra.mxu0 0.0
      %273 = vmatprep.subr.mxu0 0.0
      %274 = vmatpush1.msra.mxu0 0.0
      %275 = vmatprep.subr.mxu0 0.0
      %276 = vmatpush1.msra.mxu0 0.0
      %277 = vmatprep.subr.mxu0 0.0
      %278 = vmatpush1.msra.mxu0 0.0
      %279 = vmatprep.subr.mxu0 0.0
      %280 = vmatpush1.msra.mxu0 0.0
      %281 = vmatprep.subr.mxu0 0.0
      %282 = vmatpush1.msra.mxu0 0.0
      %283 = vmatprep.subr.mxu0 0.0
      %284 = vmatpush1.msra.mxu0 0.0
      %285 = vmatprep.subr.mxu0 0.0
      %286 = vmatpush1.msra.mxu0 0.0
      %287 = vmatprep.subr.mxu0 0.0
      %288 = vmatpush1.msra.mxu0 0.0
      %289 = vmatprep.subr.mxu0 0.0
      %290 = vmatpush1.msra.mxu0 0.0
      %291 = vmatprep.subr.mxu0 0.0
      %292 = vmatpush1.msra.mxu0 0.0
      %293 = vmatprep.subr.mxu0 0.0
      %294 = vmatpush1.msra.mxu0 0.0
      %295 = vmatprep.subr.mxu0 0.0
      %296 = vmatpush1.msra.mxu0 0.0
      %297 = vmatprep.subr.mxu0 0.0
      %298 = vmatpush1.msra.mxu0 0.0
      %299 = vmatprep.subr.mxu0 0.0
      %300 = vmatpush1.msra.mxu0 0.0
      %301 = vmatprep.subr.mxu0 0.0
      %302 = vmatpush1.msra.mxu0 0.0
      %303 = vmatprep.subr.mxu0 0.0
      %304 = vmatpush1.msra.mxu0 0.0
      %305 = vmatprep.subr.mxu0 0.0
      %306 = vmatpush1.msra.mxu0 0.0
      %307 = vmatprep.subr.mxu0 0.0
      %308 = vmatpush1.msra.mxu0 0.0
      %309 = vmatprep.subr.mxu0 0.0
      %310 = vmatpush1.msra.mxu0 0.0
      %311 = vmatprep.subr.mxu0 0.0
      %312 = vmatpush1.msra.mxu0 0.0
      %313 = vmatprep.subr.mxu0 0.0
      %314 = vmatpush1.msra.mxu0 0.0
      %315 = vmatprep.subr.mxu0 0.0
      %316 = vmatpush1.msra.mxu0 0.0
      %317 = vmatprep.subr.mxu0 0.0
      %318 = vmatpush1.msra.mxu0 0.0
      %319 = vmatprep.subr.mxu0 0.0
      %320 = vmatpush1.msra.mxu0 0.0
      %321 = vmatprep.mubr.f32.mxu0 0.0
      %322 = vmatmul.mubr.f32.gmra.mrb[0].mxu0 %v242
      %v323 = vpop.f32.mrb[0].mxu0
      %v324 = vadd.f32 %v238, %v323
      %v325 = vpop.f32.mrb[0].mxu0
      %326 = vmatprep.mubr.f32.mxu0 0.0
      %327 = vmatmul.mubr.f32.gmra.mrb[0].mxu0 %v245
      %v328 = vpop.f32.mrb[0].mxu0
      %v329 = vadd.f32 %v238, %v328
      %v330 = vpop.f32.mrb[0].mxu0
      %331 = vmatprep.mubr.f32.mxu0 0.0
      %332 = vmatmul.mubr.f32.gmra.mrb[0].mxu0 %v248
      %v333 = vpop.f32.mrb[0].mxu0
      %v334 = vadd.f32 %v238, %v333
      %v335 = vpop.f32.mrb[0].mxu0
      %336 = vmatprep.mubr.f32.mxu0 0.0
      %337 = vmatmul.mubr.f32.gmra.mrb[0].mxu0 %v251
      %v338 = vpop.f32.mrb[0].mxu0
      %v339 = vadd.f32 %v238, %v338
      %v340 = vpop.f32.mrb[0].mxu0
      %341 = vdwg.mxu0
      %v342 = vmax.f32 %v324, 0.0
      %v343 = vmax.f32 %v329, 0.0
      %v344 = vmax.f32 %v334, 0.0
      %v345 = vmax.f32 %v339, 0.0
      %v346 = vld [vmem:[%s3] sm:$0xff]
      %v347 = vld [vmem:[%s3 + $0x8] sm:$0xff]
      %v348 = vld [vmem:[%s3 + $0x10] sm:$0xff]
      %v349 = vld [vmem:[%s3 + $0x18] sm:$0xff]
      %v350 = vld [vmem:[%s3 + $0x20] sm:$0xff]
      %v351 = vld [vmem:[%s3 + $0x28] sm:$0xff]
      %v352 = vld [vmem:[%s3 + $0x30] sm:$0xff]
      %v353 = vld [vmem:[%s3 + $0x38] sm:$0xff]
      %v354 = vld [vmem:[%s3 + $0x40] sm:$0xff]
      %v355 = vld [vmem:[%s3 + $0x48] sm:$0xff]
      %v356 = vld [vmem:[%s3 + $0x50] sm:$0xff]
      %v357 = vld [vmem:[%s3 + $0x58] sm:$0xff]
      %v358 = vld [vmem:[%s3 + $0x60] sm:$0xff]
      %v359 = vld [vmem:[%s3 + $0x68] sm:$0xff]
      %v360 = vld [vmem:[%s3 + $0x70] sm:$0xff]
      %v361 = vld [vmem:[%s3 + $0x78] sm:$0xff]
      %v362 = vld [vmem:[%s4] sm:$0x1]
      %v364 = vlaneseq
      %v365 = vshrl.u32 %v364, 7
      %v366 = vsub.s32 0, %v365
      %v367 = vrot.slane %v362, %v366
      %369 = vmatprep.subr.mxu0 0.0
      %370 = vmatpush1.msra.mxu0 %v346
      %371 = vmatprep.subr.mxu0 0.0
      %372 = vmatpush1.msra.mxu0 %v347
      %373 = vmatprep.subr.mxu0 0.0
      %374 = vmatpush1.msra.mxu0 %v348
      %375 = vmatprep.subr.mxu0 0.0
      %376 = vmatpush1.msra.mxu0 %v349
      %377 = vmatprep.subr.mxu0 0.0
      %378 = vmatpush1.msra.mxu0 %v350
      %379 = vmatprep.subr.mxu0 0.0
      %380 = vmatpush1.msra.mxu0 %v351
      %381 = vmatprep.subr.mxu0 0.0
      %382 = vmatpush1.msra.mxu0 %v352
      %383 = vmatprep.subr.mxu0 0.0
      %384 = vmatpush1.msra.mxu0 %v353
      %385 = vmatprep.subr.mxu0 0.0
      %386 = vmatpush1.msra.mxu0 %v354
      %387 = vmatprep.subr.mxu0 0.0
      %388 = vmatpush1.msra.mxu0 %v355
      %389 = vmatprep.subr.mxu0 0.0
      %390 = vmatpush1.msra.mxu0 %v356
      %391 = vmatprep.subr.mxu0 0.0
      %392 = vmatpush1.msra.mxu0 %v357
      %393 = vmatprep.subr.mxu0 0.0
      %394 = vmatpush1.msra.mxu0 %v358
      %395 = vmatprep.subr.mxu0 0.0
      %396 = vmatpush1.msra.mxu0 %v359
      %397 = vmatprep.subr.mxu0 0.0
      %398 = vmatpush1.msra.mxu0 %v360
      %399 = vmatprep.subr.mxu0 0.0
      %400 = vmatpush1.msra.mxu0 %v361
      %401 = vmatprep.subr.mxu0 0.0
      %402 = vmatpush1.msra.mxu0 0.0
      %403 = vmatprep.subr.mxu0 0.0
      %404 = vmatpush1.msra.mxu0 0.0
      %405 = vmatprep.subr.mxu0 0.0
      %406 = vmatpush1.msra.mxu0 0.0
      %407 = vmatprep.subr.mxu0 0.0
      %408 = vmatpush1.msra.mxu0 0.0
      %409 = vmatprep.subr.mxu0 0.0
      %410 = vmatpush1.msra.mxu0 0.0
      %411 = vmatprep.subr.mxu0 0.0
      %412 = vmatpush1.msra.mxu0 0.0
      %413 = vmatprep.subr.mxu0 0.0
      %414 = vmatpush1.msra.mxu0 0.0
      %415 = vmatprep.subr.mxu0 0.0
      %416 = vmatpush1.msra.mxu0 0.0
      %417 = vmatprep.subr.mxu0 0.0
      %418 = vmatpush1.msra.mxu0 0.0
      %419 = vmatprep.subr.mxu0 0.0
      %420 = vmatpush1.msra.mxu0 0.0
      %421 = vmatprep.subr.mxu0 0.0
      %422 = vmatpush1.msra.mxu0 0.0
      %423 = vmatprep.subr.mxu0 0.0
      %424 = vmatpush1.msra.mxu0 0.0
      %425 = vmatprep.subr.mxu0 0.0
      %426 = vmatpush1.msra.mxu0 0.0
      %427 = vmatprep.subr.mxu0 0.0
      %428 = vmatpush1.msra.mxu0 0.0
      %429 = vmatprep.subr.mxu0 0.0
      %430 = vmatpush1.msra.mxu0 0.0
      %431 = vmatprep.subr.mxu0 0.0
      %432 = vmatpush1.msra.mxu0 0.0
      %433 = vmatprep.mubr.f32.mxu0 0.0
      %434 = vmatmul.mubr.f32.gmra.mrb[0].mxu0 %v342
      %v435 = vpop.f32.mrb[0].mxu0
      %v436 = vadd.f32 %v367, %v435
      %v437 = vpop.f32.mrb[0].mxu0
      %438 = vmatprep.mubr.f32.mxu0 0.0
      %439 = vmatmul.mubr.f32.gmra.mrb[0].mxu0 %v343
      %v440 = vpop.f32.mrb[0].mxu0
      %v441 = vadd.f32 %v367, %v440
      %v442 = vpop.f32.mrb[0].mxu0
      %443 = vmatprep.mubr.f32.mxu0 0.0
      %444 = vmatmul.mubr.f32.gmra.mrb[0].mxu0 %v344
      %v445 = vpop.f32.mrb[0].mxu0
      %v446 = vadd.f32 %v367, %v445
      %v447 = vpop.f32.mrb[0].mxu0
      %448 = vmatprep.mubr.f32.mxu0 0.0
      %449 = vmatmul.mubr.f32.gmra.mrb[0].mxu0 %v345
      %v450 = vpop.f32.mrb[0].mxu0
      %v451 = vadd.f32 %v367, %v450
      %v452 = vpop.f32.mrb[0].mxu0
      %453 = vdwg.mxu0
      %vm454 = vcmask 56320
      %455 = vst.msk [vmem:[%s226] sm:$0xff] %vm454, %v436
      %456 = vst.msk [vmem:[%s226 + $0x8] sm:$0xff] %vm454, %v441
      %457 = vst.msk [vmem:[%s226 + $0x10] sm:$0xff] %vm454, %v446
      %458 = vst.msk [vmem:[%s226 + $0x18] sm:$0xff] %vm454, %v451
      %s459 = smul.u32 4, %s16
      %p460 = scmp.lt.s32.totalorder %s459, 7
      %s461 = scalar_select %p460, %s459, 7
      %s462 = smul.addr %s461, 8
      %s463 = scalar_lea.vmem %s5, %s462
      // Predicated region
      $region41: #{wcmi_forward.1} parent=39 // pred_check
        %p464 = pneg %p144
      $region42: #{wcmi_forward.1} parent=39 // pred_check_branch
        %466 = sbr.rel (%p464) target = $region44
      $region43: #{wcmi_forward.1} parent=39 // pred_region
        %s467 = smul.u32 4, %s16
      $region44: #{wcmi_forward.1} parent=39 // pred_fallthru
        _
    $region40: #{wcmi_forward.1} parent=5 // pred_fallthru
      _
    %p468 = scmp.le.s32.totalorder 2, %s11
    // Predicated region
    $region45: #{wcmi_forward.1} parent=5 // pred_check
      %p469 = pneg %p468
    $region46: #{wcmi_forward.1} parent=5 // pred_check_branch
      %471 = sbr.rel (%p469) target = $region48
    $region47: #{wcmi_forward.1} parent=5 // pred_region
      %s472 = ssub.s32 %s11, 2
      // Predicated region
      $region49: #{wcmi_forward.1} parent=47 // pred_check
        %p473 = pneg %p150
      $region50: #{wcmi_forward.1} parent=47 // pred_check_branch
        %475 = sbr.rel (%p473) target = $region52
      $region51: #{wcmi_forward.1} parent=47 // pred_region
        %s476 = smul.u32 4, %s17
        %p477 = scmp.lt.s32.totalorder %s476, 7
        %s478 = scalar_select %p477, %s476, 7
        %s479 = smul.addr %s478, 8
        %s480 = scalar_lea.vmem %s5, %s479
      $region52: #{wcmi_forward.1} parent=47 // pred_fallthru
        _
    $region48: #{wcmi_forward.1} parent=5 // pred_fallthru
      _
  $region6: #{wcmi_forward.1} parent=0 // loop_footer
    %s15 = sadd.s32 1, %s11
  $region7: #{wcmi_forward.1} parent=0 // loop_footer_branch
    %10 = sbr.rel target = $region3
  $region8: #{wcmi_forward.1} parent=0 // loop_exit
    _

</llo_original>
